<compile_context>
chip_gen: v5e
topology: v5e:2x2
jax: 0.10.0
libtpu: 0.0.40
codegen_flags: <defaults>
</compile_context>

<pallas_src>
import jax
import jax.numpy as jnp
from jax.experimental import pallas as pl
from jax.experimental.pallas import tpu as pltpu


def _relu_kernel(x_ref, o_ref):
    # Single VPU vmax against a scalar 0.0 over the whole (1, 726) tile.
    o_ref[...] = jnp.maximum(x_ref[...], 0.0)


def relu_pallas(x: jax.Array) -> jax.Array:
    """ReLU over an NCHW tensor using one grid-less Pallas TPU kernel call."""
    orig_shape = x.shape
    n = x.size

    # Free, layout-preserving reshape: put all elements on the lane axis.
    # [1, 726, 1, 1] -> (1, 726).  Mosaic handles the 726 -> 768 lane padding
    # inside the input/output DMAs, so no explicit pad or slice is needed.
    x2d = x.reshape(1, n)

    out2d = pl.pallas_call(
        _relu_kernel,
        out_shape=jax.ShapeDtypeStruct(x2d.shape, x2d.dtype),
        in_specs=[pl.BlockSpec(memory_space=pltpu.MemorySpace.VMEM)],
        out_specs=pl.BlockSpec(memory_space=pltpu.MemorySpace.VMEM),
        # In-place: no second HBM buffer.  Effective because the jit wrapper
        # donates the argument (see relu_pallas_jit below).
        input_output_aliases={0: 0},
        cost_estimate=pl.CostEstimate(
            flops=n,
            transcendentals=0,
            bytes_accessed=2 * n * x.dtype.itemsize,
        ),
    )(x2d)

    return out2d.reshape(orig_shape)


# Donate the input so the pallas_call alias stays truly in-place (no defensive
# copy of an undonated caller buffer).
relu_pallas_jit = jax.jit(relu_pallas, donate_argnums=0)


if __name__ == "__main__":
    key = jax.random.PRNGKey(0)
    # Same shape as the original module's input: [1, 726, 1, 1]
    x337 = jax.random.normal(key, (1, 726, 1, 1), dtype=jnp.float32)

    # Compute the pure-JAX reference BEFORE calling the kernel: x337 is
    # donated to the jitted wrapper and must not be read afterwards.
    ref = jnp.maximum(x337, 0.0)
    jax.block_until_ready(ref)

    x338 = relu_pallas_jit(x337)
    jax.block_until_ready(x338)

    assert x338.shape == (1, 726, 1, 1)
    assert jnp.allclose(x338, ref), "mismatch vs. reference ReLU"

    print("KERNEL_OK")
</pallas_src>

<mosaic_0001>
module attributes {stable_mosaic.version = 11 : i64} {
  func.func @_relu_kernel(%arg0: memref<1x726xf32, #tpu.memory_space<vmem>>, %arg1: memref<1x726xf32, #tpu.memory_space<vmem>>) attributes {dimension_semantics = [], scalar_prefetch = 0 : i64, scratch_operands = 0 : i64, tpu.core_type = #tpu.core_type<tc>} {
    %c0 = arith.constant 0 : index
    %c0_0 = arith.constant 0 : index
    %0 = vector.load %arg0[%c0, %c0_0] : memref<1x726xf32, #tpu.memory_space<vmem>>, vector<1x726xf32>
    %cst = arith.constant 0.000000e+00 : f32
    %1 = vector.broadcast %cst : f32 to vector<1x726xf32>
    %2 = arith.maximumf %0, %1 : vector<1x726xf32>
    %c0_1 = arith.constant 0 : index
    %c0_2 = arith.constant 0 : index
    %3 = vector.load %arg1[%c0_1, %c0_2] : memref<1x726xf32, #tpu.memory_space<vmem>>, vector<1x726xf32>
    tpu.vector_store %arg1[%c0_1, %c0_2], %2 {strides = array<i32>} : memref<1x726xf32, #tpu.memory_space<vmem>>, vector<1x726xf32>,
    return
  }
}

</mosaic_0001>

<llo_original>
// kernel: relu_pallas.1
$region0: #{relu_pallas.1}
  #allocation0 [shape = 'u32[]', space=smem, size = 0x4, offset = 0x4, fixed_abs, tag = 'smem constant byte address 0x4 - core index']
  #allocation1 [shape = 'u32[72,128]{1,0:T(1,128)}', space=vmem, size = 0x9000, scoped, tag = 'internal scratch']
  %s0 = inlined_call_operand.hbm [shape: f32[1,726], index: 0, kind: input, shape index: {}, may-alias: {0,1}]
  %s1 = inlined_call_operand.hbm [shape: f32[1,726], index: 1, kind: output, shape index: {}, may-alias: {0,1}]
  %s2 = sld [smem:[#allocation0]]
  $region18: #{relu_pallas.1} parent=0
    _
  %s4 = ssub.s32 1, %s2
  %s5 = scalar_select 0, %s4, %s2
  $region1: #{relu_pallas.1} parent=0
    #allocation2 [shape = 'u8[3072]{0}', space=vmem, size = 0xc00, scoped, tag = 'input window, operand 0, single buffered']
    #allocation3 [shape = 's32[1]{0}', space=sflag, size = 0x4, scoped, tag = 'scoped memory for relu_pallas.1']
    #allocation4 [shape = 's32[1]{0}', space=sflag, size = 0x4, scoped, tag = 'scoped memory for relu_pallas.1']
    #allocation5 [shape = 'u8[3072]{0}', space=vmem, size = 0xc00, scoped, tag = 'output window, operand 0, single buffered']
    %6 = vsyncpa [#allocation3], 0
    %7 = vsyncpa [#allocation4], 0
    // Predicated region
    $region2: #{relu_pallas.1} parent=1 // pred_check
      _
    $region3: #{relu_pallas.1} parent=1 // pred_check_branch
      %9 = sbr.rel (0) target = $region5
    $region4: #{relu_pallas.1} parent=1 // pred_region
      %11 = vsyncadd [#allocation3], 0
      %s13 = sshll.u32 %s0, 4
      %s14 = int_to_ptr.hbm [resolvable:$true] %s13
      %s15 = sshll.u32 [#allocation2], 4
      %s16 = int_to_ptr.vmem [resolvable:$true] %s15
      %18 = dma.hbm_to_vmem [thread:$0]  %s14, 96, %s16, [#allocation3]
    $region5: #{relu_pallas.1} parent=1 // pred_fallthru
      _
    // Predicated region
    $region6: #{relu_pallas.1} parent=1 // pred_check
      _
    $region7: #{relu_pallas.1} parent=1 // pred_check_branch
      %20 = sbr.rel (0) target = $region9
    $region8: #{relu_pallas.1} parent=1 // pred_region
      %22 = dma.done [#allocation3], 96
    $region9: #{relu_pallas.1} parent=1 // pred_fallthru
      _
    %v23 = vld [vmem:[#allocation2] sm:$0x3f]
    %v24 = vmax.f32 %v23, 0.0
    %v25 = vlaneseq
    %vm26 = vcmp.ge.s32.totalorder %v25, 0
    %vm27 = vcmp.lt.s32.totalorder %v25, 726
    %vm28 = vmand %vm26, %vm27
    %29 = vst.msk [vmem:[#allocation5] sm:$0x3f] %vm28, %v24
    // Predicated region
    $region10: #{relu_pallas.1} parent=1 // pred_check
      _
    $region11: #{relu_pallas.1} parent=1 // pred_check_branch
      %31 = sbr.rel (0) target = $region13
    $region12: #{relu_pallas.1} parent=1 // pred_region
      %33 = vsyncadd [#allocation4], 0
      %s35 = sshll.u32 [#allocation5], 4
      %s36 = int_to_ptr.vmem [resolvable:$true] %s35
      %s37 = sshll.u32 %s1, 4
      %s38 = int_to_ptr.hbm [resolvable:$true] %s37
      %40 = dma.vmem_to_hbm [thread:$0]  %s36, 96, %s38, [#allocation4]
    $region13: #{relu_pallas.1} parent=1 // pred_fallthru
      _
    // Predicated region
    $region14: #{relu_pallas.1} parent=1 // pred_check
      _
    $region15: #{relu_pallas.1} parent=1 // pred_check_branch
      %42 = sbr.rel (0) target = $region17
    $region16: #{relu_pallas.1} parent=1 // pred_region
      %44 = dma.done [#allocation4], 96
    $region17: #{relu_pallas.1} parent=1 // pred_fallthru
      _
    %45 = vsyncpa [#allocation3], 1
    %46 = vsyncpa [#allocation4], 1

</llo_original>
